<compile_context>
chip_gen: v6e
topology: v6e:2x2x1
jax: 0.10.0
libtpu: 0.0.40
codegen_flags: <defaults>
</compile_context>

<pallas_src>
import functools

import jax
import jax.numpy as jnp
from jax.experimental import pallas as pl
from jax.experimental.pallas import tpu as pltpu


HIDDEN = 64
LOG_STD_MIN = -20.0
LOG_STD_MAX = 0.0


def _round_up(x, m):
    return ((x + m - 1) // m) * m


def actor_kernel(xn_ref, w1_ref, w2h_ref, b_ref, out_ref, *, in_dim, out_dim):
    """One batch tile: 3 MXU matmuls (bf16 in, f32 acc) + tanh/clip/exp + sample.

    xn_ref  : [TB, in_dim + out_dim]         bf16 = [ state | noise ]
    w1_ref  : [in_dim, HIDDEN]               bf16
    w2h_ref : [HIDDEN, HIDDEN + 2*out_dim]   bf16 = [ W2 | Wm | Ws ]
    b_ref   : [3, max(HIDDEN, 2*out_dim)]    f32  rows = b1, b2, [bm|bs]  (lane-0 aligned)
    out_ref : [TB, 3*out_dim]                f32  = [ action | mean | std ]
    """
    x = xn_ref[:, 0:in_dim]                                      # bf16
    noise = xn_ref[:, in_dim:in_dim + out_dim].astype(jnp.float32)

    b1 = b_ref[0:1, 0:HIDDEN]
    b2 = b_ref[1:2, 0:HIDDEN]
    bh = b_ref[2:3, 0:2 * out_dim]

    # bf16 operands into the MXU, f32 accumulation; nonlinearities in f32.
    h1 = jnp.tanh(
        jnp.dot(x, w1_ref[...], preferred_element_type=jnp.float32) + b1
    )
    h2 = jnp.tanh(
        jnp.dot(h1.astype(jnp.bfloat16), w2h_ref[:, 0:HIDDEN],
                preferred_element_type=jnp.float32) + b2
    )

    # Fused mean/log_std head: single matmul, slice the lanes afterwards.
    head = jnp.dot(
        h2.astype(jnp.bfloat16), w2h_ref[:, HIDDEN:HIDDEN + 2 * out_dim],
        preferred_element_type=jnp.float32,
    ) + bh
    mean = head[:, 0:out_dim]
    log_std = jnp.clip(head[:, out_dim:2 * out_dim], LOG_STD_MIN, LOG_STD_MAX)
    std = jnp.exp(log_std)

    # Normal(mean, std).sample() via reparameterization with external noise.
    action = mean + std * noise

    # Single lane-packed store instead of three tiny masked stores.
    out_ref[...] = jnp.concatenate([action, mean, std], axis=-1)


def actor_forward(state, noise, params, *, batch_tile=4096, min_pallas_batch=512):
    """state: [B, in_dim] f32, noise: [B, out_dim] f32 -> (action, mean, std)."""
    B, in_dim = state.shape
    out_dim = noise.shape[1]
    w1, w2h, bias = params

    # Small-batch fast path: a single-tile pallas_call is launch-overhead bound;
    # XLA fuses this tiny MLP fine.  (Pass min_pallas_batch=1 to force Pallas.)
    if B < min_pallas_batch:
        return reference_forward(state, noise, params)

    # Batch tile: as large as possible (amortize per-step overhead), but capped
    # so the grid has >=2 steps when B >= 16 (lets v7x split across its 2 TCs).
    tb = min(batch_tile, B)
    if B >= 16:
        tb = min(tb, _round_up(pl.cdiv(B, 2), 8))
    grid = (pl.cdiv(B, tb),)

    # Pack state|noise into one bf16 stream; weights fed to the MXU as bf16.
    # TODO(synk): in production, store the weights in bf16 to avoid re-casting per call.
    xn = jnp.concatenate([state, noise], axis=1).astype(jnp.bfloat16)
    w1b = w1.astype(jnp.bfloat16)
    w2hb = w2h.astype(jnp.bfloat16)

    kernel = functools.partial(actor_kernel, in_dim=in_dim, out_dim=out_dim)

    packed = pl.pallas_call(
        kernel,
        out_shape=jax.ShapeDtypeStruct((B, 3 * out_dim), jnp.float32),
        grid=grid,
        in_specs=[
            # Batch-tiled input: auto double-buffered across grid steps.
            pl.BlockSpec((tb, in_dim + out_dim), lambda i: (i, 0)),
            # Weights/bias: constant index_map -> resident in VMEM.
            pl.BlockSpec(w1b.shape, lambda i: (0, 0)),
            pl.BlockSpec(w2hb.shape, lambda i: (0, 0)),
            pl.BlockSpec(bias.shape, lambda i: (0, 0)),
        ],
        out_specs=pl.BlockSpec((tb, 3 * out_dim), lambda i: (i, 0)),
        compiler_params=pltpu.CompilerParams(
            dimension_semantics=("parallel",),
            vmem_limit_bytes=32 * 1024 * 1024,  # raises v5e's 16 MiB scoped default
        ),
    )(xn, w1b, w2hb, bias)

    action = packed[:, 0:out_dim]
    mean = packed[:, out_dim:2 * out_dim]
    std = packed[:, 2 * out_dim:3 * out_dim]
    return action, mean, std


def init_params(key, in_dim, out_dim):
    """Deterministic init mirroring the PyTorch module:
    orthogonal(gain=sqrt(2)) + zero bias for fc1/fc2,
    uniform(-0.003, 0.003) for the mean / log_std heads (weights and biases).
    Weights stored as [in, out]; the second layer and both heads are packed into
    one [HIDDEN, HIDDEN+2*out_dim] buffer; biases are packed lane-0-aligned into
    a [3, max(HIDDEN, 2*out_dim)] array (row0=b1, row1=b2, row2=[bm|bs])."""
    k1, k2, k3, k4, k5, k6 = jax.random.split(key, 6)
    ortho = jax.nn.initializers.orthogonal(scale=jnp.sqrt(2.0))
    init_w = 0.003

    w1 = ortho(k1, (in_dim, HIDDEN), jnp.float32)
    w2 = ortho(k2, (HIDDEN, HIDDEN), jnp.float32)
    wm = jax.random.uniform(k3, (HIDDEN, out_dim), jnp.float32, -init_w, init_w)
    ws = jax.random.uniform(k5, (HIDDEN, out_dim), jnp.float32, -init_w, init_w)

    b1 = jnp.zeros((HIDDEN,), jnp.float32)
    b2 = jnp.zeros((HIDDEN,), jnp.float32)
    bm = jax.random.uniform(k4, (out_dim,), jnp.float32, -init_w, init_w)
    bs = jax.random.uniform(k6, (out_dim,), jnp.float32, -init_w, init_w)

    w2h = jnp.concatenate([w2, wm, ws], axis=1)            # [H, H + 2*out_dim]

    width = max(HIDDEN, 2 * out_dim)
    bias = jnp.zeros((3, width), jnp.float32)
    bias = bias.at[0, 0:HIDDEN].set(b1)
    bias = bias.at[1, 0:HIDDEN].set(b2)
    bias = bias.at[2, 0:out_dim].set(bm)
    bias = bias.at[2, out_dim:2 * out_dim].set(bs)
    return (w1, w2h, bias)


def reference_forward(state, noise, params):
    """Pure-JAX f32 reference (same packed params). Also the small-batch path."""
    w1, w2h, bias = params
    out_dim = noise.shape[1]
    w2 = w2h[:, :HIDDEN]
    wh = w2h[:, HIDDEN:]
    b1 = bias[0:1, 0:HIDDEN]
    b2 = bias[1:2, 0:HIDDEN]
    bh = bias[2:3, 0:2 * out_dim]

    h1 = jnp.tanh(state @ w1 + b1)
    h2 = jnp.tanh(h1 @ w2 + b2)
    head = h2 @ wh + bh
    mean = head[:, :out_dim]
    log_std = jnp.clip(head[:, out_dim:2 * out_dim], LOG_STD_MIN, LOG_STD_MAX)
    std = jnp.exp(log_std)
    return mean + std * noise, mean, std


def _check(got, ref, name):
    a, m, s = got
    ra, rm, rs = ref
    # bf16 MXU operands -> loosened tolerances vs. the f32 reference.
    assert jnp.allclose(a, ra, atol=2e-2, rtol=2e-2), f"{name}: action mismatch"
    assert jnp.allclose(m, rm, atol=2e-2, rtol=2e-2), f"{name}: mean mismatch"
    assert jnp.allclose(s, rs, atol=2e-2, rtol=2e-2), f"{name}: std mismatch"


if __name__ == "__main__":
    key = jax.random.PRNGKey(0)
    k_param, k_state, k_noise, k_state2, k_noise2 = jax.random.split(key, 5)

    batch, in_dim, out_dim = 8, 24, 4  # BipedalWalker-ish obs/action dims
    params = init_params(k_param, in_dim, out_dim)
    state = jax.random.normal(k_state, (batch, in_dim), jnp.float32)
    noise = jax.random.normal(k_noise, (batch, out_dim), jnp.float32)

    # Force the Pallas path at this tiny demo size (min_pallas_batch=1).
    out = actor_forward(state, noise, params, min_pallas_batch=1)
    jax.block_until_ready(out)
    _check(out, reference_forward(state, noise, params), "single-tile")

    # Multi-step grid sanity check (partial last tile, pipelined batch axis).
    batch2 = 200
    state2 = jax.random.normal(k_state2, (batch2, in_dim), jnp.float32)
    noise2 = jax.random.normal(k_noise2, (batch2, out_dim), jnp.float32)
    out2 = actor_forward(state2, noise2, params, batch_tile=64, min_pallas_batch=1)
    jax.block_until_ready(out2)
    _check(out2, reference_forward(state2, noise2, params), "multi-tile")

    print("KERNEL_OK")
</pallas_src>

<mosaic_0001>
module attributes {stable_mosaic.version = 11 : i64} {
  func.func @actor_kernel(%arg0: i32, %arg1: memref<8x28xbf16, #tpu.memory_space<vmem>>, %arg2: memref<24x64xbf16, #tpu.memory_space<vmem>>, %arg3: memref<64x72xbf16, #tpu.memory_space<vmem>>, %arg4: memref<3x64xf32, #tpu.memory_space<vmem>>, %arg5: memref<8x12xf32, #tpu.memory_space<vmem>>) attributes {dimension_semantics = [#tpu.dimension_semantics<parallel>], iteration_bounds = array<i64: 1>, scalar_prefetch = 0 : i64, scratch_operands = 0 : i64, tpu.core_type = #tpu.core_type<tc>, window_params = [{transform_indices = @transform_0, window_bounds = array<i64: 8, 28>}, {pipeline_mode = #tpu.pipeline_mode<synchronous>, transform_indices = @transform_1, window_bounds = array<i64: 24, 64>}, {pipeline_mode = #tpu.pipeline_mode<synchronous>, transform_indices = @transform_2, window_bounds = array<i64: 64, 72>}, {pipeline_mode = #tpu.pipeline_mode<synchronous>, transform_indices = @transform_3, window_bounds = array<i64: 3, 64>}, {transform_indices = @transform_4, window_bounds = array<i64: 8, 12>}]} {
    %c0 = arith.constant 0 : index
    %c0_0 = arith.constant 0 : index
    %0 = vector.load %arg1[%c0, %c0_0] : memref<8x28xbf16, #tpu.memory_space<vmem>>, vector<8x24xbf16>
    %c0_1 = arith.constant 0 : index
    %c24 = arith.constant 24 : index
    %1 = vector.load %arg1[%c0_1, %c24] : memref<8x28xbf16, #tpu.memory_space<vmem>>, vector<8x4xbf16>
    %2 = arith.extf %1 : vector<8x4xbf16> to vector<8x4xf32>
    %c0_2 = arith.constant 0 : index
    %c0_3 = arith.constant 0 : index
    %3 = vector.load %arg4[%c0_2, %c0_3] : memref<3x64xf32, #tpu.memory_space<vmem>>, vector<1x64xf32>
    %c1 = arith.constant 1 : index
    %c0_4 = arith.constant 0 : index
    %4 = vector.load %arg4[%c1, %c0_4] : memref<3x64xf32, #tpu.memory_space<vmem>>, vector<1x64xf32>
    %c2 = arith.constant 2 : index
    %c0_5 = arith.constant 0 : index
    %5 = vector.load %arg4[%c2, %c0_5] : memref<3x64xf32, #tpu.memory_space<vmem>>, vector<1x8xf32>
    %c0_6 = arith.constant 0 : index
    %c0_7 = arith.constant 0 : index
    %6 = vector.load %arg2[%c0_6, %c0_7] : memref<24x64xbf16, #tpu.memory_space<vmem>>, vector<24x64xbf16>
    %cst = arith.constant dense<0.000000e+00> : vector<8x64xf32>
    %7 = tpu.matmul %0, %6, %cst {dimension_numbers = #tpu.dot_dimension_numbers<[1], [0], [0], [1], [0, 0, 1, 1], [], []>} : vector<8x24xbf16>, vector<24x64xbf16>, vector<8x64xf32> -> vector<8x64xf32>
    %8 = vector.broadcast %3 : vector<1x64xf32> to vector<8x64xf32>
    %9 = arith.addf %7, %8 : vector<8x64xf32>
    %10 = math.tanh %9 : vector<8x64xf32>
    %11 = arith.truncf %10 : vector<8x64xf32> to vector<8x64xbf16>
    %c0_8 = arith.constant 0 : index
    %c0_9 = arith.constant 0 : index
    %12 = vector.load %arg3[%c0_8, %c0_9] : memref<64x72xbf16, #tpu.memory_space<vmem>>, vector<64x64xbf16>
    %cst_10 = arith.constant dense<0.000000e+00> : vector<8x64xf32>
    %13 = tpu.matmul %11, %12, %cst_10 {dimension_numbers = #tpu.dot_dimension_numbers<[1], [0], [0], [1], [0, 0, 1, 1], [], []>} : vector<8x64xbf16>, vector<64x64xbf16>, vector<8x64xf32> -> vector<8x64xf32>
    %14 = vector.broadcast %4 : vector<1x64xf32> to vector<8x64xf32>
    %15 = arith.addf %13, %14 : vector<8x64xf32>
    %16 = math.tanh %15 : vector<8x64xf32>
    %17 = arith.truncf %16 : vector<8x64xf32> to vector<8x64xbf16>
    %c0_11 = arith.constant 0 : index
    %c64 = arith.constant 64 : index
    %18 = vector.load %arg3[%c0_11, %c64] : memref<64x72xbf16, #tpu.memory_space<vmem>>, vector<64x8xbf16>
    %cst_12 = arith.constant dense<0.000000e+00> : vector<8x8xf32>
    %19 = tpu.matmul %17, %18, %cst_12 {dimension_numbers = #tpu.dot_dimension_numbers<[1], [0], [0], [1], [0, 0, 1, 1], [], []>} : vector<8x64xbf16>, vector<64x8xbf16>, vector<8x8xf32> -> vector<8x8xf32>
    %20 = vector.broadcast %5 : vector<1x8xf32> to vector<8x8xf32>
    %21 = arith.addf %19, %20 : vector<8x8xf32>
    %22 = vector.extract_strided_slice %21 {offsets = [0, 0], sizes = [8, 4], strides = [1, 1]} : vector<8x8xf32> to vector<8x4xf32>
    %23 = vector.extract_strided_slice %21 {offsets = [0, 4], sizes = [8, 4], strides = [1, 1]} : vector<8x8xf32> to vector<8x4xf32>
    %cst_13 = arith.constant -2.000000e+01 : f32
    %cst_14 = arith.constant 0.000000e+00 : f32
    %24 = vector.broadcast %cst_13 : f32 to vector<8x4xf32>
    %25 = arith.maximumf %24, %23 : vector<8x4xf32>
    %26 = vector.broadcast %cst_14 : f32 to vector<8x4xf32>
    %27 = arith.minimumf %26, %25 : vector<8x4xf32>
    %28 = math.exp %27 : vector<8x4xf32>
    %29 = arith.mulf %28, %2 : vector<8x4xf32>
    %30 = arith.addf %22, %29 : vector<8x4xf32>
    %31 = tpu.concatenate %30, %22, %28 in 1 : vector<8x4xf32>, vector<8x4xf32>, vector<8x4xf32> -> vector<8x12xf32>
    %c0_15 = arith.constant 0 : index
    %c0_16 = arith.constant 0 : index
    %32 = vector.load %arg5[%c0_15, %c0_16] : memref<8x12xf32, #tpu.memory_space<vmem>>, vector<8x12xf32>
    tpu.vector_store %arg5[%c0_15, %c0_16], %31 {strides = array<i32>} : memref<8x12xf32, #tpu.memory_space<vmem>>, vector<8x12xf32>,
    return
  }
  func.func @transform_0(%arg0: i32) -> (i32, i32) {
    %c0_i32 = arith.constant 0 : i32
    %c0_i32_0 = arith.constant 0 : i32
    return %arg0, %c0_i32 : i32, i32
  }
  func.func @transform_1(%arg0: i32) -> (i32, i32) {
    %c0_i32 = arith.constant 0 : i32
    %c0_i32_0 = arith.constant 0 : i32
    %c0_i32_1 = arith.constant 0 : i32
    return %c0_i32, %c0_i32_0 : i32, i32
  }
  func.func @transform_2(%arg0: i32) -> (i32, i32) {
    %c0_i32 = arith.constant 0 : i32
    %c0_i32_0 = arith.constant 0 : i32
    %c0_i32_1 = arith.constant 0 : i32
    return %c0_i32, %c0_i32_0 : i32, i32
  }
  func.func @transform_3(%arg0: i32) -> (i32, i32) {
    %c0_i32 = arith.constant 0 : i32
    %c0_i32_0 = arith.constant 0 : i32
    %c0_i32_1 = arith.constant 0 : i32
    return %c0_i32, %c0_i32_0 : i32, i32
  }
  func.func @transform_4(%arg0: i32) -> (i32, i32) {
    %c0_i32 = arith.constant 0 : i32
    %c0_i32_0 = arith.constant 0 : i32
    return %arg0, %c0_i32 : i32, i32
  }
}

</mosaic_0001>

<llo_original>
// kernel: tpu_custom_call.1
$region0: #{tpu_custom_call.1}
  #allocation0 [shape = 'u32[]', space=smem, size = 0x4, offset = 0x4, fixed_abs, tag = 'smem constant byte address 0x4 - core index']
  #allocation1 [shape = 'u32[144,128]{1,0:T(1,128)}', space=vmem, size = 0x12000, scoped, tag = 'internal scratch']
  %s0 = inlined_call_operand.hbm [shape: bf16[8,28], index: 0, kind: input, shape index: {}]
  %s1 = inlined_call_operand.hbm [shape: bf16[24,64], index: 1, kind: input, shape index: {}]
  %s2 = inlined_call_operand.hbm [shape: bf16[64,72], index: 2, kind: input, shape index: {}]
  %s3 = inlined_call_operand.vmem [shape: f32[3,64], index: 3, kind: input, shape index: {}]
  %s4 = inlined_call_operand.hbm [shape: f32[8,12], index: 4, kind: output, shape index: {}]
  %s5 = sld [smem:[#allocation0]]
  $region38: #{tpu_custom_call.1} parent=0
    _
  %s7 = ssub.s32 1, %s5
  %s8 = scalar_select 0, %s7, %s5
  $region1: #{tpu_custom_call.1} parent=0
    #allocation2 [shape = 'u8[2048]{0}', space=vmem, size = 0x800, scoped, tag = 'input window, operand 0, single buffered']
    #allocation3 [shape = 's32[1]{0}', space=sflag, size = 0x4, scoped, tag = 'scoped memory for tpu_custom_call.1']
    #allocation4 [shape = 's32[1]{0}', space=sflag, size = 0x4, scoped, tag = 'scoped memory for tpu_custom_call.1']
    #allocation5 [shape = 'u8[6144]{0}', space=vmem, size = 0x1800, scoped, tag = 'input window, operand 1, single buffered']
    #allocation6 [shape = 's32[1]{0}', space=sflag, size = 0x4, scoped, tag = 'scoped memory for tpu_custom_call.1']
    #allocation7 [shape = 'u8[16384]{0}', space=vmem, size = 0x4000, scoped, tag = 'input window, operand 2, single buffered']
    #allocation8 [shape = 'u8[4096]{0}', space=vmem, size = 0x1000, scoped, tag = 'output window, operand 0, single buffered']
    %9 = vsyncpa [#allocation3], 0
    %10 = vsyncpa [#allocation6], 0
    %11 = vsyncpa [#allocation4], 0
    // Predicated region
    $region2: #{tpu_custom_call.1} parent=1 // pred_check
      _
    $region3: #{tpu_custom_call.1} parent=1 // pred_check_branch
      %13 = sbr.rel (0) target = $region5
    $region4: #{tpu_custom_call.1} parent=1 // pred_region
      %s15 = ssub.s32 64, 64
      %16 = vsyncadd [#allocation3], %s15
      %s18 = sshll.u32 [#allocation2], 4
      %s19 = int_to_ptr.vmem [resolvable:$true] %s18
      %21 = dma.hbm_to_vmem [thread:$0]  %s0, 64, %s19, [#allocation3]
    $region5: #{tpu_custom_call.1} parent=1 // pred_fallthru
      _
    // Predicated region
    $region6: #{tpu_custom_call.1} parent=1 // pred_check
      _
    $region7: #{tpu_custom_call.1} parent=1 // pred_check_branch
      %23 = sbr.rel (0) target = $region9
    $region8: #{tpu_custom_call.1} parent=1 // pred_region
      %s25 = ssub.s32 192, 192
      %26 = vsyncadd [#allocation6], %s25
      %s27 = sshll.u32 [#allocation5], 4
      %s28 = int_to_ptr.vmem [resolvable:$true] %s27
      %33 = dma.hbm_to_vmem [thread:$0]  %s1, 192, %s28, [#allocation6], 64, 64, 4
    $region9: #{tpu_custom_call.1} parent=1 // pred_fallthru
      _
    // Predicated region
    $region10: #{tpu_custom_call.1} parent=1 // pred_check
      _
    $region11: #{tpu_custom_call.1} parent=1 // pred_check_branch
      %35 = sbr.rel (0) target = $region13
    $region12: #{tpu_custom_call.1} parent=1 // pred_region
      %s37 = ssub.s32 512, 512
      %38 = vsyncadd [#allocation6], %s37
      %s39 = sshll.u32 [#allocation7], 4
      %s40 = int_to_ptr.vmem [resolvable:$true] %s39
      %45 = dma.hbm_to_vmem [thread:$0]  %s2, 512, %s40, [#allocation6], 64, 64, 4
    $region13: #{tpu_custom_call.1} parent=1 // pred_fallthru
      _
    // Predicated region
    $region14: #{tpu_custom_call.1} parent=1 // pred_check
      _
    $region15: #{tpu_custom_call.1} parent=1 // pred_check_branch
      %47 = sbr.rel (0) target = $region17
    $region16: #{tpu_custom_call.1} parent=1 // pred_region
      _
    $region17: #{tpu_custom_call.1} parent=1 // pred_fallthru
      _
    // Predicated region
    $region18: #{tpu_custom_call.1} parent=1 // pred_check
      _
    $region19: #{tpu_custom_call.1} parent=1 // pred_check_branch
      %49 = sbr.rel (0) target = $region21
    $region20: #{tpu_custom_call.1} parent=1 // pred_region
      %50 = dma.done [#allocation3], 64
    $region21: #{tpu_custom_call.1} parent=1 // pred_fallthru
      _
    // Predicated region
    $region22: #{tpu_custom_call.1} parent=1 // pred_check
      _
    $region23: #{tpu_custom_call.1} parent=1 // pred_check_branch
      %52 = sbr.rel (0) target = $region25
    $region24: #{tpu_custom_call.1} parent=1 // pred_region
      %53 = dma.done [#allocation6], 192
    $region25: #{tpu_custom_call.1} parent=1 // pred_fallthru
      _
    // Predicated region
    $region26: #{tpu_custom_call.1} parent=1 // pred_check
      _
    $region27: #{tpu_custom_call.1} parent=1 // pred_check_branch
      %55 = sbr.rel (0) target = $region29
    $region28: #{tpu_custom_call.1} parent=1 // pred_region
      %56 = dma.done [#allocation6], 512
    $region29: #{tpu_custom_call.1} parent=1 // pred_fallthru
      _
    %v58 = vld [vmem:[#allocation2] sm:$0xf]
    %v59 = vunpack.c.l.bf16 %v58
    %v60 = vld [vmem:[%s3] sm:$0x1]
    %v61 = vld [vmem:[%s3 + $0x1] sm:$0x1]
    %v62 = vld [vmem:[%s3 + $0x2] sm:$0x1]
    %v63 = vld [vmem:[#allocation5] sm:$0xf]
    %v64 = vld [vmem:[#allocation5 + $0x4] sm:$0xf]
    %v65 = vld [vmem:[#allocation5 + $0x8] sm:$0xf]
    %v66 = vlaneseq
    %v67 = vshrl.u32 %v66, 7
    %v68 = vsub.s32 0, %v67
    %v69 = vrot.slane %v60, %v68
    %v73 = vunpack.c.l.b16 %v63
    %v74 = vunpack.c.l.b16 %v64
    %v75 = vunpack.c.l.b16 %v65
    %v76 = vpack.c.b16 %v74, %v73
    %v77 = vpack.c.b16 %v75, %v75
    %vm79 = vcmask 195584
    %v81 = vsel %vm79, %v58, 0
    %vm83 = vcmask 1043456
    %v85 = vsel %vm83, %v77, 0
    %87 = vmatprep.subr.bf16.mxu0 0
    %88 = vmatpush1.bf16.msra.mxu0 0
    %89 = vmatprep.subr.bf16.mxu0 0
    %90 = vmatpush1.bf16.msra.mxu0 0
    %91 = vmatprep.subr.bf16.mxu0 0
    %92 = vmatpush1.bf16.msra.mxu0 0
    %93 = vmatprep.subr.bf16.mxu0 0
    %94 = vmatpush1.bf16.msra.mxu0 0
    %95 = vmatprep.subr.bf16.mxu0 0
    %96 = vmatpush1.bf16.msra.mxu0 0
    %97 = vmatprep.subr.bf16.mxu0 0
    %98 = vmatpush1.bf16.msra.mxu0 0
    %99 = vmatprep.subr.bf16.mxu0 0
    %100 = vmatpush1.bf16.msra.mxu0 %v85
    %101 = vmatprep.subr.bf16.mxu0 0
    %102 = vmatpush1.bf16.msra.mxu0 %v76
    %103 = vmatprep.subr.bf16.mxu0 0
    %104 = vmatpush2.bf16.msra.mxu0 0
    %105 = vmatprep.subr.bf16.mxu0 0
    %106 = vmatpush2.bf16.msra.mxu0 0
    %107 = vmatprep.subr.bf16.mxu0 0
    %108 = vmatpush2.bf16.msra.mxu0 0
    %109 = vmatprep.subr.bf16.mxu0 0
    %110 = vmatpush2.bf16.msra.mxu0 0
    %111 = vmatprep.subr.bf16.mxu0 0
    %112 = vmatpush2.bf16.msra.mxu0 0
    %113 = vmatprep.subr.bf16.mxu0 0
    %114 = vmatpush2.bf16.msra.mxu0 0
    %115 = vmatprep.subr.bf16.mxu0 0
    %116 = vmatpush2.bf16.msra.mxu0 0
    %117 = vmatprep.subr.bf16.mxu0 0
    %118 = vmatpush2.bf16.msra.mxu0 0
    %119 = vmatprep.mubr.bf16.mxu0 0
    %120 = vmatmul.mubr.bf16.gmra.mxu0 %v81
    %v121 = vpop.f32.mrf.mxu0
    %v122 = vadd.f32 %v69, %v121
    %v123 = vpop.f32.mrf.mxu0
    %v124 = vpop.f32.mrf.mxu0
    %v125 = vpop.f32.mrf.mxu0
    %126 = vdwg.mxu0
    %v127 = vtanh.pop %v122
    %v128 = vpack.c.bf16 %v127, %v127
    %v129 = vld [vmem:[#allocation7] sm:$0xf]
    %v130 = vld [vmem:[#allocation7 + $0x4] sm:$0xf]
    %v131 = vld [vmem:[#allocation7 + $0x8] sm:$0xf]
    %v132 = vld [vmem:[#allocation7 + $0xc] sm:$0xf]
    %v133 = vld [vmem:[#allocation7 + $0x10] sm:$0xf]
    %v134 = vld [vmem:[#allocation7 + $0x14] sm:$0xf]
    %v135 = vld [vmem:[#allocation7 + $0x18] sm:$0xf]
    %v136 = vld [vmem:[#allocation7 + $0x1c] sm:$0xf]
    %v137 = vlaneseq
    %v138 = vshrl.u32 %v137, 7
    %v139 = vsub.s32 0, %v138
    %v140 = vrot.slane %v61, %v139
    %v149 = vunpack.c.l.b16 %v129
    %v150 = vunpack.c.l.b16 %v130
    %v151 = vunpack.c.l.b16 %v131
    %v152 = vunpack.c.l.b16 %v132
    %v153 = vunpack.c.l.b16 %v133
    %v154 = vunpack.c.l.b16 %v134
    %v155 = vunpack.c.l.b16 %v135
    %v156 = vunpack.c.l.b16 %v136
    %v157 = vpack.c.b16 %v150, %v149
    %v158 = vpack.c.b16 %v152, %v151
    %v159 = vpack.c.b16 %v154, %v153
    %v160 = vpack.c.b16 %v156, %v155
    %vm165 = vcmask 523264
    %v167 = vsel %vm165, %v128, 0
    %169 = vmatprep.subr.bf16.mxu0 0
    %170 = vmatpush1.bf16.msra.mxu0 0
    %171 = vmatprep.subr.bf16.mxu0 0
    %172 = vmatpush1.bf16.msra.mxu0 0
    %173 = vmatprep.subr.bf16.mxu0 0
    %174 = vmatpush1.bf16.msra.mxu0 0
    %175 = vmatprep.subr.bf16.mxu0 0
    %176 = vmatpush1.bf16.msra.mxu0 0
    %177 = vmatprep.subr.bf16.mxu0 0
    %178 = vmatpush1.bf16.msra.mxu0 %v160
    %179 = vmatprep.subr.bf16.mxu0 0
    %180 = vmatpush1.bf16.msra.mxu0 %v159
    %181 = vmatprep.subr.bf16.mxu0 0
    %182 = vmatpush1.bf16.msra.mxu0 %v158
    %183 = vmatprep.subr.bf16.mxu0 0
    %184 = vmatpush1.bf16.msra.mxu0 %v157
    %185 = vmatprep.subr.bf16.mxu0 0
    %186 = vmatpush2.bf16.msra.mxu0 0
    %187 = vmatprep.subr.bf16.mxu0 0
    %188 = vmatpush2.bf16.msra.mxu0 0
    %189 = vmatprep.subr.bf16.mxu0 0
    %190 = vmatpush2.bf16.msra.mxu0 0
    %191 = vmatprep.subr.bf16.mxu0 0
    %192 = vmatpush2.bf16.msra.mxu0 0
    %193 = vmatprep.subr.bf16.mxu0 0
    %194 = vmatpush2.bf16.msra.mxu0 0
    %195 = vmatprep.subr.bf16.mxu0 0
    %196 = vmatpush2.bf16.msra.mxu0 0
    %197 = vmatprep.subr.bf16.mxu0 0
    %198 = vmatpush2.bf16.msra.mxu0 0
    %199 = vmatprep.subr.bf16.mxu0 0
    %200 = vmatpush2.bf16.msra.mxu0 0
    %201 = vmatprep.mubr.bf16.mxu0 0
    %202 = vmatmul.mubr.bf16.gmra.mxu0 %v167
    %v203 = vpop.f32.mrf.mxu0
    %v204 = vadd.f32 %v140, %v203
    %v205 = vpop.f32.mrf.mxu0
    %v206 = vpop.f32.mrf.mxu0
    %v207 = vpop.f32.mrf.mxu0
    %208 = vdwg.mxu0
    %v209 = vtanh.pop %v204
    %v210 = vpack.c.bf16 %v209, %v209
    %v211 = vlaneseq
    %v212 = vshrl.u32 %v211, 7
    %v213 = vsub.s32 0, %v212
    %v214 = vrot.slane %v62, %v213
    %215 = vrot.lane.b32.xlu0 %v157, 64
    %v216 = vpop.permute.xlu0 %215
    %217 = vrot.lane.b32.xlu0 %v158, 64
    %v218 = vpop.permute.xlu0 %217
    %219 = vrot.lane.b32.xlu0 %v159, 64
    %v220 = vpop.permute.xlu0 %219
    %221 = vrot.lane.b32.xlu0 %v160, 64
    %v222 = vpop.permute.xlu0 %221
    %v228 = vsel %vm165, %v210, 0
    %230 = vmatprep.subr.bf16.mxu0 0
    %231 = vmatpush1.bf16.msra.mxu0 0
    %232 = vmatprep.subr.bf16.mxu0 0
    %233 = vmatpush1.bf16.msra.mxu0 0
    %234 = vmatprep.subr.bf16.mxu0 0
    %235 = vmatpush1.bf16.msra.mxu0 0
    %236 = vmatprep.subr.bf16.mxu0 0
    %237 = vmatpush1.bf16.msra.mxu0 0
    %238 = vmatprep.subr.bf16.mxu0 0
    %239 = vmatpush1.bf16.msra.mxu0 %v222
    %240 = vmatprep.subr.bf16.mxu0 0
    %241 = vmatpush1.bf16.msra.mxu0 %v220
    %242 = vmatprep.subr.bf16.mxu0 0
    %243 = vmatpush1.bf16.msra.mxu0 %v218
    %244 = vmatprep.subr.bf16.mxu0 0
    %245 = vmatpush1.bf16.msra.mxu0 %v216
    %246 = vmatprep.subr.bf16.mxu0 0
    %247 = vmatpush2.bf16.msra.mxu0 0
    %248 = vmatprep.subr.bf16.mxu0 0
    %249 = vmatpush2.bf16.msra.mxu0 0
    %250 = vmatprep.subr.bf16.mxu0 0
    %251 = vmatpush2.bf16.msra.mxu0 0
    %252 = vmatprep.subr.bf16.mxu0 0
    %253 = vmatpush2.bf16.msra.mxu0 0
    %254 = vmatprep.subr.bf16.mxu0 0
    %255 = vmatpush2.bf16.msra.mxu0 0
    %256 = vmatprep.subr.bf16.mxu0 0
    %257 = vmatpush2.bf16.msra.mxu0 0
    %258 = vmatprep.subr.bf16.mxu0 0
    %259 = vmatpush2.bf16.msra.mxu0 0
    %260 = vmatprep.subr.bf16.mxu0 0
    %261 = vmatpush2.bf16.msra.mxu0 0
    %262 = vmatprep.mubr.bf16.mxu0 0
    %263 = vmatmul.mubr.bf16.gmra.mxu0 %v228
    %v264 = vpop.f32.mrf.mxu0
    %v265 = vadd.f32 %v214, %v264
    %v266 = vpop.f32.mrf.mxu0
    %v267 = vpop.f32.mrf.mxu0
    %v268 = vpop.f32.mrf.mxu0
    %269 = vdwg.mxu0
    %v270 = vmax.f32 %v265, -20.0
    %v271 = vmin.f32 %v270, 0.0
    %v272 = vmul.f32 %v271, 1.442695
    %v273 = vpow.pop %v272
    %275 = vrot.lane.b32.xlu0 %v59, 108
    %v276 = vpop.permute.xlu0 %275
    %v278 = vmul.f32 %v273, %v276
    %280 = vrot.lane.b32.xlu0 %v278, 124
    %v281 = vpop.permute.xlu0 %280
    %v283 = vadd.f32 %v265, %v281
    %285 = vrot.lane.b32.xlu0 %v265, 4
    %v286 = vpop.permute.xlu0 %285
    %289 = vrot.lane.b32.xlu0 %v273, 4
    %v290 = vpop.permute.xlu0 %289
    %vm292 = vcmask 31744
    %v293 = vsel %vm292, %v283, %v286
    %vm294 = vcmask 64512
    %v295 = vsel %vm294, %v293, %v290
    %vm296 = vcmask 97280
    %297 = vst.msk [vmem:[#allocation8] sm:$0xff] %vm296, %v295
    // Predicated region
    $region30: #{tpu_custom_call.1} parent=1 // pred_check
      _
    $region31: #{tpu_custom_call.1} parent=1 // pred_check_branch
      %299 = sbr.rel (0) target = $region33
    $region32: #{tpu_custom_call.1} parent=1 // pred_region
      %s301 = ssub.s32 128, 128
      %302 = vsyncadd [#allocation4], %s301
      %s304 = sshll.u32 [#allocation8], 4
      %s305 = int_to_ptr.vmem [resolvable:$true] %s304
      %307 = dma.vmem_to_hbm [thread:$0]  %s305, 128, %s4, [#allocation4]
    $region33: #{tpu_custom_call.1} parent=1 // pred_fallthru
      _
    // Predicated region
    $region34: #{tpu_custom_call.1} parent=1 // pred_check
      _
    $region35: #{tpu_custom_call.1} parent=1 // pred_check_branch
      %309 = sbr.rel (0) target = $region37
    $region36: #{tpu_custom_call.1} parent=1 // pred_region
      %310 = dma.done [#allocation4], 128
    $region37: #{tpu_custom_call.1} parent=1 // pred_fallthru
      _
    %311 = vsyncpa [#allocation3], 1
    %312 = vsyncpa [#allocation6], 1
    %313 = vsyncpa [#allocation4], 1

</llo_original>
